<compile_context>
chip_gen: v5e
topology: v5e:2x2
jax: 0.10.0
libtpu: 0.0.40
codegen_flags: <defaults>
</compile_context>

<pallas_src>
import functools

import jax
import jax.numpy as jnp
from jax.experimental import pallas as pl
from jax.experimental.pallas import tpu as pltpu


def _round_up(x, m):
    return (x + m - 1) // m * m


def _prop_layer_kernel(adj_ref, z_ref, wl_ref, post_ref, pre_ref,
                       y_ref, znext_ref, *, clamp):
    # adj_ref : (TM, Np) bf16  -- streamed row tile of the adjacency
    # z_ref   : (Np, Cp) f32   -- full pre-normalized labels (resident)
    # wl_ref  : (TM, Cp) f32   -- (1 - alpha) * Y0 row tile
    # post_ref, pre_ref : (TM, 1) f32 per-row scale vectors
    a = adj_ref[...].astype(jnp.float32)            # exact: A entries are 0/1
    acc = jnp.dot(a, z_ref[...], preferred_element_type=jnp.float32)
    y = wl_ref[...] + post_ref[...] * acc
    if clamp:
        y = jnp.clip(y, 0.0, 1.0)
    y_ref[...] = y
    znext_ref[...] = pre_ref[...] * y


def _vmem_bytes(tm, np_, cp):
    return (2 * tm * np_ * 2        # adj row tile, bf16, double-buffered
            + 2 * np_ * cp * 4      # resident z
            + 2 * 3 * tm * cp * 4   # weighted-label in + two outputs
            + 2 * 2 * tm * 4)       # pre / post vectors


def label_propagation(adj, labels, *, num_layers, alpha, adj_norm='DAD',
                      mask=None, clamp=True, num_classes=None, row_tile=512):
    """adj: (N, N) dense adjacency, adj[dst, src] = 1 for edge src->dst.
       labels: (N,) integer class ids or (N, C) float label distribution."""
    assert adj_norm in ('DAD', 'DA', 'AD')

    if jnp.issubdtype(labels.dtype, jnp.integer):
        if num_classes is None:
            # NOTE: host sync; pass num_classes explicitly when under jax.jit.
            num_classes = int(labels.max()) + 1
        labels = jax.nn.one_hot(labels.reshape(-1), num_classes,
                                dtype=jnp.float32)
    labels = labels.astype(jnp.float32)

    y0 = labels
    if mask is not None:
        y0 = jnp.where(mask.reshape(-1, 1), labels, jnp.zeros_like(labels))

    N, C = y0.shape
    Cp = _round_up(max(C, 1), 128)          # lane-dense class dim
    Np8 = _round_up(N, 8)

    # Pick the largest row tile that fits comfortably (double-buffered) in VMEM.
    budget = 48 * 2**20
    tm = 8
    for cand in (512, 256, 128, 64, 32, 16, 8):
        if cand <= row_tile and _vmem_bytes(cand, Np8, Cp) <= budget:
            tm = cand
            break
    TM = min(tm, Np8)                       # multiple of 8 by construction
    Np = _round_up(N, TM)

    # Zero-pad: padded nodes have empty neighbourhoods -> output rows stay 0
    # and are sliced off; padded adjacency columns are zero so they never
    # pollute real rows.  Padded class columns are zero and sliced off.
    pad_n, pad_c = Np - N, Cp - C
    adj_f32 = jnp.pad(adj.astype(jnp.float32), ((0, pad_n), (0, pad_n)))
    y0_p = jnp.pad(y0, ((0, pad_n), (0, pad_c)))

    # Degrees / normalization precomputed once (no in-kernel cross-lane reduce);
    # alpha folded into the post-scale so the kernel has no per-layer alpha mul.
    degs = jnp.maximum(jnp.sum(adj_f32, axis=1, keepdims=True), 1.0)   # (Np, 1)
    if adj_norm == 'DAD':
        norm = jax.lax.rsqrt(degs)
        pre, post = norm, alpha * norm
    elif adj_norm == 'AD':
        norm = 1.0 / degs
        pre, post = norm, jnp.full_like(norm, alpha)
    else:  # 'DA'
        norm = 1.0 / degs
        pre, post = jnp.ones_like(norm), alpha * norm

    weighted = (1.0 - alpha) * y0_p
    adj_bf16 = adj_f32.astype(jnp.bfloat16)   # 0/1 entries -> exact in bf16

    flops = 2 * Np * Np * Cp
    bytes_accessed = (Np * Np * 2            # adj
                      + 2 * Np * Cp * 4      # z in + weighted
                      + 2 * Np * 4           # pre + post
                      + 2 * Np * Cp * 4)     # y out + z out
    vmem_limit = int(min(max(2 * _vmem_bytes(TM, Np, Cp), 8 * 2**20),
                         64 * 2**20))

    layer = pl.pallas_call(
        functools.partial(_prop_layer_kernel, clamp=clamp),
        grid=(Np // TM,),
        in_specs=[
            pl.BlockSpec((TM, Np), lambda i: (i, 0)),   # adj row tile (streamed)
            pl.BlockSpec((Np, Cp), lambda i: (0, 0)),   # z, fully resident
            pl.BlockSpec((TM, Cp), lambda i: (i, 0)),   # weighted label tile
            pl.BlockSpec((TM, 1), lambda i: (i, 0)),    # post scale
            pl.BlockSpec((TM, 1), lambda i: (i, 0)),    # pre scale
        ],
        out_specs=(
            pl.BlockSpec((TM, Cp), lambda i: (i, 0)),   # y (this layer)
            pl.BlockSpec((TM, Cp), lambda i: (i, 0)),   # z for next layer
        ),
        out_shape=(
            jax.ShapeDtypeStruct((Np, Cp), jnp.float32),
            jax.ShapeDtypeStruct((Np, Cp), jnp.float32),
        ),
        compiler_params=pltpu.CompilerParams(
            dimension_semantics=("parallel",),
            vmem_limit_bytes=vmem_limit),
        cost_estimate=pl.CostEstimate(flops=flops,
                                      bytes_accessed=bytes_accessed,
                                      transcendentals=0),
    )

    y = y0_p
    z = pre * y0_p
    for _ in range(num_layers):
        y, z = layer(adj_bf16, z, weighted, post, pre)

    return y[:N, :C]


def _reference(adj, y0, num_layers, alpha, adj_norm='DAD', clamp=True):
    degs = jnp.maximum(adj.sum(axis=1, keepdims=True), 1.0)
    norm = jnp.power(degs, -0.5 if adj_norm == 'DAD' else -1.0)
    weighted = (1.0 - alpha) * y0
    y = y0
    for _ in range(num_layers):
        if adj_norm in ('DAD', 'AD'):
            y = norm * y
        y = alpha * (adj @ y)
        if adj_norm in ('DAD', 'DA'):
            y = y * norm
        y = weighted + y
        if clamp:
            y = jnp.clip(y, 0.0, 1.0)
    return y


if __name__ == "__main__":
    key = jax.random.PRNGKey(0)
    k_adj, k_lab, k_mask = jax.random.split(key, 3)

    N, C = 64, 8            # 64 nodes, 8 label classes
    num_layers, alpha = 3, 0.9

    # deterministic random directed graph (~10% density)
    adj = jax.random.bernoulli(k_adj, p=0.1, shape=(N, N)).astype(jnp.float32)
    labels = jax.random.randint(k_lab, (N,), 0, C)
    mask = jax.random.bernoulli(k_mask, p=0.5, shape=(N,))

    # row_tile=32 -> grid=(2,) so the multi-tile path is exercised even at N=64
    out = label_propagation(adj, labels, num_layers=num_layers, alpha=alpha,
                            adj_norm='DAD', mask=mask, clamp=True,
                            num_classes=C, row_tile=32)
    out = jax.block_until_ready(out)

    # check against pure-JAX reference
    y0 = jnp.where(mask.reshape(-1, 1),
                   jax.nn.one_hot(labels, C, dtype=jnp.float32), 0.0)
    ref = _reference(adj, y0, num_layers, alpha, 'DAD', True)
    assert out.shape == (N, C)
    assert jnp.allclose(out, ref, atol=1e-5, rtol=1e-5)

    print("KERNEL_OK")
</pallas_src>

<mosaic_0001>
module attributes {stable_mosaic.version = 11 : i64} {
  func.func @_prop_layer_kernel(%arg0: i32, %arg1: memref<32x64xbf16, #tpu.memory_space<vmem>>, %arg2: memref<64x128xf32, #tpu.memory_space<vmem>>, %arg3: memref<32x128xf32, #tpu.memory_space<vmem>>, %arg4: memref<32x1xf32, #tpu.memory_space<vmem>>, %arg5: memref<32x1xf32, #tpu.memory_space<vmem>>, %arg6: memref<32x128xf32, #tpu.memory_space<vmem>>, %arg7: memref<32x128xf32, #tpu.memory_space<vmem>>) attributes {dimension_semantics = [#tpu.dimension_semantics<parallel>], iteration_bounds = array<i64: 2>, scalar_prefetch = 0 : i64, scratch_operands = 0 : i64, tpu.core_type = #tpu.core_type<tc>, window_params = [{transform_indices = @transform_0, window_bounds = array<i64: 32, 64>}, {pipeline_mode = #tpu.pipeline_mode<synchronous>, transform_indices = @transform_1, window_bounds = array<i64: 64, 128>}, {transform_indices = @transform_2, window_bounds = array<i64: 32, 128>}, {transform_indices = @transform_3, window_bounds = array<i64: 32, 1>}, {transform_indices = @transform_4, window_bounds = array<i64: 32, 1>}, {transform_indices = @transform_5, window_bounds = array<i64: 32, 128>}, {transform_indices = @transform_6, window_bounds = array<i64: 32, 128>}]} {
    %c0 = arith.constant 0 : index
    %c0_0 = arith.constant 0 : index
    %0 = vector.load %arg1[%c0, %c0_0] : memref<32x64xbf16, #tpu.memory_space<vmem>>, vector<32x64xbf16>
    %1 = arith.extf %0 : vector<32x64xbf16> to vector<32x64xf32>
    %c0_1 = arith.constant 0 : index
    %c0_2 = arith.constant 0 : index
    %2 = vector.load %arg2[%c0_1, %c0_2] : memref<64x128xf32, #tpu.memory_space<vmem>>, vector<64x128xf32>
    %cst = arith.constant dense<0.000000e+00> : vector<32x128xf32>
    %3 = tpu.matmul %1, %2, %cst {dimension_numbers = #tpu.dot_dimension_numbers<[1], [0], [0], [1], [0, 0, 1, 1], [], []>} : vector<32x64xf32>, vector<64x128xf32>, vector<32x128xf32> -> vector<32x128xf32>
    %c0_3 = arith.constant 0 : index
    %c0_4 = arith.constant 0 : index
    %4 = vector.load %arg3[%c0_3, %c0_4] : memref<32x128xf32, #tpu.memory_space<vmem>>, vector<32x128xf32>
    %c0_5 = arith.constant 0 : index
    %c0_6 = arith.constant 0 : index
    %5 = vector.load %arg4[%c0_5, %c0_6] : memref<32x1xf32, #tpu.memory_space<vmem>>, vector<32x1xf32>
    %6 = vector.broadcast %5 : vector<32x1xf32> to vector<32x128xf32>
    %7 = arith.mulf %6, %3 : vector<32x128xf32>
    %8 = arith.addf %4, %7 : vector<32x128xf32>
    %cst_7 = arith.constant 0.000000e+00 : f32
    %cst_8 = arith.constant 1.000000e+00 : f32
    %9 = vector.broadcast %cst_7 : f32 to vector<32x128xf32>
    %10 = arith.maximumf %9, %8 : vector<32x128xf32>
    %11 = vector.broadcast %cst_8 : f32 to vector<32x128xf32>
    %12 = arith.minimumf %11, %10 : vector<32x128xf32>
    %c0_9 = arith.constant 0 : index
    %c0_10 = arith.constant 0 : index
    %13 = vector.load %arg6[%c0_9, %c0_10] : memref<32x128xf32, #tpu.memory_space<vmem>>, vector<32x128xf32>
    tpu.vector_store %arg6[%c0_9, %c0_10], %12 {strides = array<i32>} : memref<32x128xf32, #tpu.memory_space<vmem>>, vector<32x128xf32>,
    %c0_11 = arith.constant 0 : index
    %c0_12 = arith.constant 0 : index
    %14 = vector.load %arg5[%c0_11, %c0_12] : memref<32x1xf32, #tpu.memory_space<vmem>>, vector<32x1xf32>
    %15 = vector.broadcast %14 : vector<32x1xf32> to vector<32x128xf32>
    %16 = arith.mulf %15, %12 : vector<32x128xf32>
    %c0_13 = arith.constant 0 : index
    %c0_14 = arith.constant 0 : index
    %17 = vector.load %arg7[%c0_13, %c0_14] : memref<32x128xf32, #tpu.memory_space<vmem>>, vector<32x128xf32>
    tpu.vector_store %arg7[%c0_13, %c0_14], %16 {strides = array<i32>} : memref<32x128xf32, #tpu.memory_space<vmem>>, vector<32x128xf32>,
    return
  }
  func.func @transform_0(%arg0: i32) -> (i32, i32) {
    %c0_i32 = arith.constant 0 : i32
    %c0_i32_0 = arith.constant 0 : i32
    return %arg0, %c0_i32 : i32, i32
  }
  func.func @transform_1(%arg0: i32) -> (i32, i32) {
    %c0_i32 = arith.constant 0 : i32
    %c0_i32_0 = arith.constant 0 : i32
    %c0_i32_1 = arith.constant 0 : i32
    return %c0_i32, %c0_i32_0 : i32, i32
  }
  func.func @transform_2(%arg0: i32) -> (i32, i32) {
    %c0_i32 = arith.constant 0 : i32
    %c0_i32_0 = arith.constant 0 : i32
    return %arg0, %c0_i32 : i32, i32
  }
  func.func @transform_3(%arg0: i32) -> (i32, i32) {
    %c0_i32 = arith.constant 0 : i32
    %c0_i32_0 = arith.constant 0 : i32
    return %arg0, %c0_i32 : i32, i32
  }
  func.func @transform_4(%arg0: i32) -> (i32, i32) {
    %c0_i32 = arith.constant 0 : i32
    %c0_i32_0 = arith.constant 0 : i32
    return %arg0, %c0_i32 : i32, i32
  }
  func.func @transform_5(%arg0: i32) -> (i32, i32) {
    %c0_i32 = arith.constant 0 : i32
    %c0_i32_0 = arith.constant 0 : i32
    return %arg0, %c0_i32 : i32, i32
  }
  func.func @transform_6(%arg0: i32) -> (i32, i32) {
    %c0_i32 = arith.constant 0 : i32
    %c0_i32_0 = arith.constant 0 : i32
    return %arg0, %c0_i32 : i32, i32
  }
}

</mosaic_0001>

<llo_original>
// kernel: tpu_custom_call.1
$region0: #{tpu_custom_call.1}
  #allocation0 [shape = 'u32[]', space=smem, size = 0x4, offset = 0x4, fixed_abs, tag = 'smem constant byte address 0x4 - core index']
  #allocation1 [shape = 'u32[72,128]{1,0:T(1,128)}', space=vmem, size = 0x9000, scoped, tag = 'internal scratch']
  %s0 = inlined_call_operand.hbm [shape: bf16[64,64], index: 0, kind: input, shape index: {}]
  %s1 = inlined_call_operand.vmem [shape: f32[64,128], index: 1, kind: input, shape index: {}]
  %s2 = inlined_call_operand.vmem [shape: f32[64,128], index: 2, kind: input, shape index: {}]
  %s3 = inlined_call_operand.vmem [shape: f32[64,1], index: 3, kind: input, shape index: {}]
  %s4 = inlined_call_operand.vmem [shape: f32[64,1], index: 4, kind: input, shape index: {}]
  %s5 = inlined_call_operand.hbm [shape: f32[64,128], index: 5, kind: output, shape index: {0}]
  %s6 = inlined_call_operand.hbm [shape: f32[64,128], index: 6, kind: output, shape index: {1}]
  %7 = xla_tuple %s5, %s6
  %s8 = sld [smem:[#allocation0]]
  $region65: #{tpu_custom_call.1} parent=0
    _
  %s10 = ssub.s32 1, %s8
  %s11 = scalar_select 0, %s10, %s8
  $region1: #{tpu_custom_call.1} parent=0
    #allocation2 [shape = 'u8[16384]{0}', space=vmem, size = 0x4000, scoped, tag = 'input window, operand 0']
    #allocation3 [shape = 's32[2]{0}', space=sflag, size = 0x8, scoped, tag = 'scoped memory for tpu_custom_call.1']
    #allocation4 [shape = 's32[2]{0}', space=sflag, size = 0x8, scoped, tag = 'scoped memory for tpu_custom_call.1']
    #allocation5 [shape = 'u8[32768]{0}', space=vmem, size = 0x8000, scoped, tag = 'output window, operand 0']
    #allocation6 [shape = 'u8[32768]{0}', space=vmem, size = 0x8000, scoped, tag = 'output window, operand 1']
    #allocation7 [shape = 's32[2]{0}', space=sflag, size = 0x8, scoped, tag = 'scoped memory for tpu_custom_call.1']
    %12 = vsyncpa [#allocation3], 0
    %s13 = scalar_lea.sflag [#allocation3], 1
    %14 = vsyncpa %s13, 0
    %15 = vsyncpa [#allocation4], 0
    %s16 = scalar_lea.sflag [#allocation4], 1
    %17 = vsyncpa %s16, 0
    %18 = vsyncpa [#allocation7], 0
    %s19 = scalar_lea.sflag [#allocation7], 1
    %20 = vsyncpa %s19, 0
    loop: start=0, step=1, limit=4
    $region2: #{tpu_custom_call.1} parent=1 // loop_pre_header
      _
    $region3: #{tpu_custom_call.1} parent=1 // loop_header
      %s22 = sphi 0, %s26
      %p23 = scmp.ge.s32.totalorder %s22, 4
      %s32 = sphi 0, %s34
      %s35 = sphi 0, %s32
      %s36 = sphi 0, %s35
      %s52 = sphi 0, %s36
      %s56 = sphi 0, %s56
      %s58 = sphi 0, %s56
      %s59 = sphi 0, %s58
      %s73 = sphi 0, %s59
      %s79 = sphi 0, %s81
      %s82 = sphi 0, %s79
      %s83 = sphi 0, %s82
      %s99 = sphi 0, %s83
      %s105 = sphi 0, %s107
      %s108 = sphi 0, %s105
      %s109 = sphi 0, %s108
      %s125 = sphi 0, %s109
      %s131 = sphi 0, %s133
      %s134 = sphi 0, %s131
      %s135 = sphi 0, %s134
      %s151 = sphi 0, %s135
      %s157 = sphi 0, %s159
      %s160 = sphi 0, %s157
      %s161 = sphi 0, %s160
      %s177 = sphi 0, %s161
      %s183 = sphi 0, %s185
      %s186 = sphi 0, %s183
      %s187 = sphi 0, %s186
      %s203 = sphi 0, %s187
    $region4: #{tpu_custom_call.1} parent=1 // loop_header_branch
      %25 = sbr.rel (%p23) target = $region8
    $region5: #{tpu_custom_call.1} parent=1 // loop_body
      %s27 = ssub.s32 %s22, 1
      %s28 = ssub.s32 %s22, 2
      %s29 = sadd.s32 %s22, 1
      %s30 = ssub.s32 %s22, %s29
      %p31 = scmp.eq.s32.totalorder %s30, 0
      %s33 = sadd.s32 %s32, 1
      %s34 = scalar_select %p31, %s32, %s33
      %p37 = pneg %p31
      %p38 = scmp.eq.s32.totalorder %s22, 1
      %p39 = por %p37, %p38
      %p40 = scmp.ne.s32.totalorder %s32, %s35
      %p41 = scmp.eq.s32.totalorder %s22, 0
      %p42 = por %p40, %p41
      %p43 = scmp.ne.s32.totalorder %s32, %s35
      %p44 = scmp.eq.s32.totalorder %s27, 1
      %p45 = por %p43, %p44
      %p46 = scmp.ne.s32.totalorder %s35, %s36
      %p47 = scmp.eq.s32.totalorder %s27, 0
      %p48 = por %p46, %p47
      %p49 = scmp.ne.s32.totalorder %s35, %s36
      %p50 = scmp.eq.s32.totalorder %s28, 1
      %p51 = por %p49, %p50
      %p53 = scmp.ne.s32.totalorder %s36, %s52
      %p54 = scmp.eq.s32.totalorder %s28, 0
      %p55 = por %p53, %p54
      %s57 = sadd.s32 %s56, 1
      %p60 = scmp.eq.s32.totalorder %s22, 1
      %p61 = scmp.ne.s32.totalorder %s56, %s58
      %p62 = scmp.eq.s32.totalorder %s22, 0
      %p63 = por %p61, %p62
      %p64 = scmp.ne.s32.totalorder %s56, %s58
      %p65 = scmp.eq.s32.totalorder %s27, 1
      %p66 = por %p64, %p65
      %p67 = scmp.ne.s32.totalorder %s58, %s59
      %p68 = scmp.eq.s32.totalorder %s27, 0
      %p69 = por %p67, %p68
      %p70 = scmp.ne.s32.totalorder %s58, %s59
      %p71 = scmp.eq.s32.totalorder %s28, 1
      %p72 = por %p70, %p71
      %p74 = scmp.ne.s32.totalorder %s59, %s73
      %p75 = scmp.eq.s32.totalorder %s28, 0
      %p76 = por %p74, %p75
      %s77 = ssub.s32 %s22, %s29
      %p78 = scmp.eq.s32.totalorder %s77, 0
      %s80 = sadd.s32 %s79, 1
      %s81 = scalar_select %p78, %s79, %s80
      %p84 = pneg %p78
      %p85 = scmp.eq.s32.totalorder %s22, 1
      %p86 = por %p84, %p85
      %p87 = scmp.ne.s32.totalorder %s79, %s82
      %p88 = scmp.eq.s32.totalorder %s22, 0
      %p89 = por %p87, %p88
      %p90 = scmp.ne.s32.totalorder %s79, %s82
      %p91 = scmp.eq.s32.totalorder %s27, 1
      %p92 = por %p90, %p91
      %p93 = scmp.ne.s32.totalorder %s82, %s83
      %p94 = scmp.eq.s32.totalorder %s27, 0
      %p95 = por %p93, %p94
      %p96 = scmp.ne.s32.totalorder %s82, %s83
      %p97 = scmp.eq.s32.totalorder %s28, 1
      %p98 = por %p96, %p97
      %p100 = scmp.ne.s32.totalorder %s83, %s99
      %p101 = scmp.eq.s32.totalorder %s28, 0
      %p102 = por %p100, %p101
      %s103 = ssub.s32 %s22, %s29
      %p104 = scmp.eq.s32.totalorder %s103, 0
      %s106 = sadd.s32 %s105, 1
      %s107 = scalar_select %p104, %s105, %s106
      %p110 = pneg %p104
      %p111 = scmp.eq.s32.totalorder %s22, 1
      %p112 = por %p110, %p111
      %p113 = scmp.ne.s32.totalorder %s105, %s108
      %p114 = scmp.eq.s32.totalorder %s22, 0
      %p115 = por %p113, %p114
      %p116 = scmp.ne.s32.totalorder %s105, %s108
      %p117 = scmp.eq.s32.totalorder %s27, 1
      %p118 = por %p116, %p117
      %p119 = scmp.ne.s32.totalorder %s108, %s109
      %p120 = scmp.eq.s32.totalorder %s27, 0
      %p121 = por %p119, %p120
      %p122 = scmp.ne.s32.totalorder %s108, %s109
      %p123 = scmp.eq.s32.totalorder %s28, 1
      %p124 = por %p122, %p123
      %p126 = scmp.ne.s32.totalorder %s109, %s125
      %p127 = scmp.eq.s32.totalorder %s28, 0
      %p128 = por %p126, %p127
      %s129 = ssub.s32 %s22, %s29
      %p130 = scmp.eq.s32.totalorder %s129, 0
      %s132 = sadd.s32 %s131, 1
      %s133 = scalar_select %p130, %s131, %s132
      %p136 = pneg %p130
      %p137 = scmp.eq.s32.totalorder %s22, 1
      %p138 = por %p136, %p137
      %p139 = scmp.ne.s32.totalorder %s131, %s134
      %p140 = scmp.eq.s32.totalorder %s22, 0
      %p141 = por %p139, %p140
      %p142 = scmp.ne.s32.totalorder %s131, %s134
      %p143 = scmp.eq.s32.totalorder %s27, 1
      %p144 = por %p142, %p143
      %p145 = scmp.ne.s32.totalorder %s134, %s135
      %p146 = scmp.eq.s32.totalorder %s27, 0
      %p147 = por %p145, %p146
      %p148 = scmp.ne.s32.totalorder %s134, %s135
      %p149 = scmp.eq.s32.totalorder %s28, 1
      %p150 = por %p148, %p149
      %p152 = scmp.ne.s32.totalorder %s135, %s151
      %p153 = scmp.eq.s32.totalorder %s28, 0
      %p154 = por %p152, %p153
      %s155 = ssub.s32 %s22, %s29
      %p156 = scmp.eq.s32.totalorder %s155, 0
      %s158 = sadd.s32 %s157, 1
      %s159 = scalar_select %p156, %s157, %s158
      %p162 = pneg %p156
      %p163 = scmp.eq.s32.totalorder %s22, 1
      %p164 = por %p162, %p163
      %p165 = scmp.ne.s32.totalorder %s157, %s160
      %p166 = scmp.eq.s32.totalorder %s22, 0
      %p167 = por %p165, %p166
      %p168 = scmp.ne.s32.totalorder %s157, %s160
      %p169 = scmp.eq.s32.totalorder %s27, 1
      %p170 = por %p168, %p169
      %p171 = scmp.ne.s32.totalorder %s160, %s161
      %p172 = scmp.eq.s32.totalorder %s27, 0
      %p173 = por %p171, %p172
      %p174 = scmp.ne.s32.totalorder %s160, %s161
      %p175 = scmp.eq.s32.totalorder %s28, 1
      %p176 = por %p174, %p175
      %p178 = scmp.ne.s32.totalorder %s161, %s177
      %p179 = scmp.eq.s32.totalorder %s28, 0
      %p180 = por %p178, %p179
      %s181 = ssub.s32 %s22, %s29
      %p182 = scmp.eq.s32.totalorder %s181, 0
      %s184 = sadd.s32 %s183, 1
      %s185 = scalar_select %p182, %s183, %s184
      %p188 = pneg %p182
      %p189 = scmp.eq.s32.totalorder %s22, 1
      %p190 = por %p188, %p189
      %p191 = scmp.ne.s32.totalorder %s183, %s186
      %p192 = scmp.eq.s32.totalorder %s22, 0
      %p193 = por %p191, %p192
      %p194 = scmp.ne.s32.totalorder %s183, %s186
      %p195 = scmp.eq.s32.totalorder %s27, 1
      %p196 = por %p194, %p195
      %p197 = scmp.ne.s32.totalorder %s186, %s187
      %p198 = scmp.eq.s32.totalorder %s27, 0
      %p199 = por %p197, %p198
      %p200 = scmp.ne.s32.totalorder %s186, %s187
      %p201 = scmp.eq.s32.totalorder %s28, 1
      %p202 = por %p200, %p201
      %p204 = scmp.ne.s32.totalorder %s187, %s203
      %p205 = scmp.eq.s32.totalorder %s28, 0
      %p206 = por %p204, %p205
      %p207 = scmp.le.s32.totalorder 1, %s22
      %p208 = scmp.lt.s32.totalorder %s22, 3
      %p209 = pnand %p207, %p208
      %p210 = pneg %p209
      // Predicated region
      $region9: #{tpu_custom_call.1} parent=5 // pred_check
        _
      $region10: #{tpu_custom_call.1} parent=5 // pred_check_branch
        %212 = sbr.rel (%p209) target = $region12
      $region11: #{tpu_custom_call.1} parent=5 // pred_region
        %s213 = ssub.s32 %s22, 1
        // Predicated region
        $region13: #{tpu_custom_call.1} parent=11 // pred_check
          %p214 = pneg %p69
        $region14: #{tpu_custom_call.1} parent=11 // pred_check_branch
          %216 = sbr.rel (%p214) target = $region16
        $region15: #{tpu_custom_call.1} parent=11 // pred_region
          _
        $region16: #{tpu_custom_call.1} parent=11 // pred_fallthru
          _
      $region12: #{tpu_custom_call.1} parent=5 // pred_fallthru
        _
      %p217 = scmp.lt.s32.totalorder %s22, 2
      // Predicated region
      $region17: #{tpu_custom_call.1} parent=5 // pred_check
        %p218 = pneg %p217
      $region18: #{tpu_custom_call.1} parent=5 // pred_check_branch
        %220 = sbr.rel (%p218) target = $region20
      $region19: #{tpu_custom_call.1} parent=5 // pred_region
        // Predicated region
        $region21: #{tpu_custom_call.1} parent=19 // pred_check
          %p221 = pneg %p42
        $region22: #{tpu_custom_call.1} parent=19 // pred_check_branch
          %223 = sbr.rel (%p221) target = $region24
        $region23: #{tpu_custom_call.1} parent=19 // pred_region
          %s224 = sand.u32 %s32, 1
          %s225 = scalar_lea.sflag [#allocation3], %s224
          %s226 = sand.u32 %s32, 1
          %s227 = smul.addr %s226, 16
          %s228 = scalar_lea.vmem [#allocation2], %s227
          %s229 = smul.u32 4, %s22
          %231 = vsyncadd %s225, 0
          %s232 = smul.addr %s229, 4
          %s233 = scalar_lea.hbm %s0, %s232
          %s234 = sshll.u32 %s233, 4
          %s235 = int_to_ptr.hbm [resolvable:$true] %s234
          %s236 = sshll.u32 %s228, 4
          %s237 = int_to_ptr.vmem [resolvable:$true] %s236
          %242 = dma.hbm_to_vmem [thread:$0]  %s235, 256, %s237, %s225, 64, 64, 4
        $region24: #{tpu_custom_call.1} parent=19 // pred_fallthru
          _
        // Predicated region
        $region25: #{tpu_custom_call.1} parent=19 // pred_check
          %p243 = pneg %p89
        $region26: #{tpu_custom_call.1} parent=19 // pred_check_branch
          %245 = sbr.rel (%p243) target = $region28
        $region27: #{tpu_custom_call.1} parent=19 // pred_region
          %s246 = smul.u32 4, %s22
          %p247 = scmp.lt.s32.totalorder %s246, 7
          %s248 = scalar_select %p247, %s246, 7
          %s249 = smul.addr %s248, 8
          %s250 = scalar_lea.vmem %s2, %s249
          %s251 = smul.u32 4, %s22
        $region28: #{tpu_custom_call.1} parent=19 // pred_fallthru
          _
        // Predicated region
        $region29: #{tpu_custom_call.1} parent=19 // pred_check
          %p252 = pneg %p115
        $region30: #{tpu_custom_call.1} parent=19 // pred_check_branch
          %254 = sbr.rel (%p252) target = $region32
        $region31: #{tpu_custom_call.1} parent=19 // pred_region
          %s255 = smul.u32 4, %s22
          %p256 = scmp.lt.s32.totalorder %s255, 7
          %s257 = scalar_select %p256, %s255, 7
          %s258 = smul.addr %s257, 8
          %s259 = scalar_lea.vmem %s3, %s258
          %s260 = smul.u32 4, %s22
        $region32: #{tpu_custom_call.1} parent=19 // pred_fallthru
          _
        // Predicated region
        $region33: #{tpu_custom_call.1} parent=19 // pred_check
          %p261 = pneg %p141
        $region34: #{tpu_custom_call.1} parent=19 // pred_check_branch
          %263 = sbr.rel (%p261) target = $region36
        $region35: #{tpu_custom_call.1} parent=19 // pred_region
          %s264 = smul.u32 4, %s22
          %p265 = scmp.lt.s32.totalorder %s264, 7
          %s266 = scalar_select %p265, %s264, 7
          %s267 = smul.addr %s266, 8
          %s268 = scalar_lea.vmem %s4, %s267
          %s269 = smul.u32 4, %s22
        $region36: #{tpu_custom_call.1} parent=19 // pred_fallthru
          _
      $region20: #{tpu_custom_call.1} parent=5 // pred_fallthru
        _
      %p270 = scmp.le.s32.totalorder 1, %s22
      %p271 = scmp.lt.s32.totalorder %s22, 3
      %p272 = pnand %p270, %p271
      %p273 = pneg %p272
      // Predicated region
      $region37: #{tpu_custom_call.1} parent=5 // pred_check
        _
      $region38: #{tpu_custom_call.1} parent=5 // pred_check_branch
        %275 = sbr.rel (%p272) target = $region40
      $region39: #{tpu_custom_call.1} parent=5 // pred_region
        %s276 = ssub.s32 %s22, 1
        %s277 = sand.u32 %s35, 1
        %s278 = scalar_lea.sflag [#allocation3], %s277
        %s279 = sand.u32 %s35, 1
        %s280 = smul.addr %s279, 16
        %s281 = scalar_lea.vmem [#allocation2], %s280
        // Predicated region
        $region41: #{tpu_custom_call.1} parent=39 // pred_check
          %p282 = pneg %p48
        $region42: #{tpu_custom_call.1} parent=39 // pred_check_branch
          %284 = sbr.rel (%p282) target = $region44
        $region43: #{tpu_custom_call.1} parent=39 // pred_region
          %286 = dma.done %s278, 256
        $region44: #{tpu_custom_call.1} parent=39 // pred_fallthru
          _
        %s287 = sand.u32 %s35, 1
        %s288 = scalar_lea.sflag [#allocation3], %s287
        %s289 = sand.u32 %s35, 1
        %s290 = smul.addr %s289, 16
        %s291 = scalar_lea.vmem [#allocation2], %s290
        %p292 = pneg %p48
        %p293 = pneg %p45
        %p294 = pneg %p69
        %p295 = pneg %p66
        %s296 = smul.u32 4, %s27
        %p297 = scmp.lt.s32.totalorder %s296, 7
        %s298 = scalar_select %p297, %s296, 7
        %s299 = smul.addr %s298, 8
        %s300 = scalar_lea.vmem %s2, %s299
        %p301 = pneg %p95
        %p302 = pneg %p92
        %s303 = smul.u32 4, %s27
        %p304 = scmp.lt.s32.totalorder %s303, 7
        %s305 = scalar_select %p304, %s303, 7
        %s306 = smul.addr %s305, 8
        %s307 = scalar_lea.vmem %s3, %s306
        %p308 = pneg %p121
        %p309 = pneg %p118
        %s310 = smul.u32 4, %s27
        %p311 = scmp.lt.s32.totalorder %s310, 7
        %s312 = scalar_select %p311, %s310, 7
        %s313 = smul.addr %s312, 8
        %s314 = scalar_lea.vmem %s4, %s313
        %p315 = pneg %p147
        %p316 = pneg %p144
        %p317 = pneg %p173
        %p318 = pneg %p170
        %s319 = sand.u32 %s160, 1
        %s320 = scalar_lea.sflag [#allocation4], %s319
        %s321 = sand.u32 %s160, 1
        %s322 = smul.addr %s321, 32
        %s323 = scalar_lea.vmem [#allocation5], %s322
        %p324 = pneg %p199
        %p325 = pneg %p196
        %s326 = sand.u32 %s186, 1
        %s327 = scalar_lea.sflag [#allocation7], %s326
        %s328 = sand.u32 %s186, 1
        %s329 = smul.addr %s328, 32
        %s330 = scalar_lea.vmem [#allocation6], %s329
        %s331 = smul.u32 4, %s27
        %s332 = smul.u32 4, %s27
        %p333 = scmp.lt.s32.totalorder %s332, 7
        %s334 = scalar_select %p333, %s332, 7
        %s335 = smul.addr %s334, 8
        %s336 = scalar_lea.vmem %s2, %s335
        %s337 = smul.u32 4, %s27
        %s338 = smul.u32 4, %s27
        %p339 = scmp.lt.s32.totalorder %s338, 7
        %s340 = scalar_select %p339, %s338, 7
        %s341 = smul.addr %s340, 8
        %s342 = scalar_lea.vmem %s3, %s341
        %s343 = smul.u32 4, %s27
        %s344 = smul.u32 4, %s27
        %p345 = scmp.lt.s32.totalorder %s344, 7
        %s346 = scalar_select %p345, %s344, 7
        %s347 = smul.addr %s346, 8
        %s348 = scalar_lea.vmem %s4, %s347
        %s349 = smul.u32 4, %s27
        %s350 = smul.u32 4, %s27
        %s351 = smul.u32 4, %s27
        %v352 = vld [vmem:[%s281] sm:$0xf]
        %v353 = vld [vmem:[%s281 + $0x4] sm:$0xf]
        %v354 = vld [vmem:[%s281 + $0x8] sm:$0xf]
        %v355 = vld [vmem:[%s281 + $0xc] sm:$0xf]
        %v356 = vunpack.c.l.bf16 %v352
        %v357 = vunpack.c.l.bf16 %v353
        %v358 = vunpack.c.l.bf16 %v354
        %v359 = vunpack.c.l.bf16 %v355
        %v360 = vld [vmem:[%s1] sm:$0xff]
        %v361 = vld [vmem:[%s1 + $0x8] sm:$0xff]
        %v362 = vld [vmem:[%s1 + $0x10] sm:$0xff]
        %v363 = vld [vmem:[%s1 + $0x18] sm:$0xff]
        %v364 = vld [vmem:[%s1 + $0x20] sm:$0xff]
        %v365 = vld [vmem:[%s1 + $0x28] sm:$0xff]
        %v366 = vld [vmem:[%s1 + $0x30] sm:$0xff]
        %v367 = vld [vmem:[%s1 + $0x38] sm:$0xff]
        %vm368 = vcmask 523264
        %v370 = vsel %vm368, %v356, 0
        %v373 = vsel %vm368, %v357, 0
        %v376 = vsel %vm368, %v358, 0
        %v379 = vsel %vm368, %v359, 0
        %381 = vmatpush.msra.mxu0 0.0
        %382 = vmatpush.msra.mxu0 0.0
        %383 = vmatpush.msra.mxu0 0.0
        %384 = vmatpush.msra.mxu0 0.0
        %385 = vmatpush.msra.mxu0 0.0
        %386 = vmatpush.msra.mxu0 0.0
        %387 = vmatpush.msra.mxu0 0.0
        %388 = vmatpush.msra.mxu0 0.0
        %389 = vmatpush.msra.mxu0 %v367
        %390 = vmatpush.msra.mxu0 %v366
        %391 = vmatpush.msra.mxu0 %v365
        %392 = vmatpush.msra.mxu0 %v364
        %393 = vmatpush.msra.mxu0 %v363
        %394 = vmatpush.msra.mxu0 %v362
        %395 = vmatpush.msra.mxu0 %v361
        %396 = vmatpush.msra.mxu0 %v360
        %397 = vmatmul.f32.gmra.mxu0 %v370
        %v398 = vpop.f32.mrf.mxu0
        %v399 = vadd.f32 0.0, %v398
        %400 = vmatmul.f32.gmra.mxu0 %v373
        %v401 = vpop.f32.mrf.mxu0
        %v402 = vadd.f32 0.0, %v401
        %403 = vmatmul.f32.gmra.mxu0 %v376
        %v404 = vpop.f32.mrf.mxu0
        %v405 = vadd.f32 0.0, %v404
        %406 = vmatmul.f32.gmra.mxu0 %v379
        %v407 = vpop.f32.mrf.mxu0
        %v408 = vadd.f32 0.0, %v407
        %409 = vdwg.mxu0
        %v410 = vld [vmem:[%s336] sm:$0xff]
        %v411 = vld [vmem:[%s336 + $0x8] sm:$0xff]
        %v412 = vld [vmem:[%s336 + $0x10] sm:$0xff]
        %v413 = vld [vmem:[%s336 + $0x18] sm:$0xff]
        %v414 = vld [vmem:[%s342] sm:$0xff]
        %v415 = vld [vmem:[%s342 + $0x8] sm:$0xff]
        %v416 = vld [vmem:[%s342 + $0x10] sm:$0xff]
        %v417 = vld [vmem:[%s342 + $0x18] sm:$0xff]
        %419 = vset.pattern.permute.xlu0 0
        %420 = vperm.xlu0 %419, %v414
        %v421 = vpop.permute.xlu0 %420
        %424 = vset.pattern.permute.xlu0 0
        %425 = vperm.xlu0 %424, %v415
        %v426 = vpop.permute.xlu0 %425
        %429 = vset.pattern.permute.xlu0 0
        %430 = vperm.xlu0 %429, %v416
        %v431 = vpop.permute.xlu0 %430
        %434 = vset.pattern.permute.xlu0 0
        %435 = vperm.xlu0 %434, %v417
        %v436 = vpop.permute.xlu0 %435
        %v438 = vmul.f32 %v421, %v399
        %v439 = vmul.f32 %v426, %v402
        %v440 = vmul.f32 %v431, %v405
        %v441 = vmul.f32 %v436, %v408
        %v442 = vadd.f32 %v410, %v438
        %v443 = vadd.f32 %v411, %v439
        %v444 = vadd.f32 %v412, %v440
        %v445 = vadd.f32 %v413, %v441
        %v446 = vmax.f32 %v442, 0.0
        %v447 = vmax.f32 %v443, 0.0
        %v448 = vmax.f32 %v444, 0.0
        %v449 = vmax.f32 %v445, 0.0
        %v450 = vmin.f32 %v446, 1.0
        %v451 = vmin.f32 %v447, 1.0
        %v452 = vmin.f32 %v448, 1.0
        %v453 = vmin.f32 %v449, 1.0
        %454 = vst [vmem:[%s323] sm:$0xff] %v450
        %455 = vst [vmem:[%s323 + $0x8] sm:$0xff] %v451
        %456 = vst [vmem:[%s323 + $0x10] sm:$0xff] %v452
        %457 = vst [vmem:[%s323 + $0x18] sm:$0xff] %v453
        %v458 = vld [vmem:[%s348] sm:$0xff]
        %v459 = vld [vmem:[%s348 + $0x8] sm:$0xff]
        %v460 = vld [vmem:[%s348 + $0x10] sm:$0xff]
        %v461 = vld [vmem:[%s348 + $0x18] sm:$0xff]
        %463 = vset.pattern.permute.xlu0 0
        %464 = vperm.xlu0 %463, %v458
        %v465 = vpop.permute.xlu0 %464
        %468 = vset.pattern.permute.xlu0 0
        %469 = vperm.xlu0 %468, %v459
        %v470 = vpop.permute.xlu0 %469
        %473 = vset.pattern.permute.xlu0 0
        %474 = vperm.xlu0 %473, %v460
        %v475 = vpop.permute.xlu0 %474
        %478 = vset.pattern.permute.xlu0 0
        %479 = vperm.xlu0 %478, %v461
        %v480 = vpop.permute.xlu0 %479
        %v482 = vmul.f32 %v465, %v450
        %v483 = vmul.f32 %v470, %v451
        %v484 = vmul.f32 %v475, %v452
        %v485 = vmul.f32 %v480, %v453
        %486 = vst [vmem:[%s330] sm:$0xff] %v482
        %487 = vst [vmem:[%s330 + $0x8] sm:$0xff] %v483
        %488 = vst [vmem:[%s330 + $0x10] sm:$0xff] %v484
        %489 = vst [vmem:[%s330 + $0x18] sm:$0xff] %v485
        %s490 = sand.u32 %s160, 1
        %s491 = scalar_lea.sflag [#allocation4], %s490
        %s492 = sand.u32 %s160, 1
        %s493 = smul.addr %s492, 32
        %s494 = scalar_lea.vmem [#allocation5], %s493
        %s495 = sand.u32 %s186, 1
        %s496 = scalar_lea.sflag [#allocation7], %s495
        %s497 = sand.u32 %s186, 1
        %s498 = smul.addr %s497, 32
        %s499 = scalar_lea.vmem [#allocation6], %s498
        // Predicated region
        $region45: #{tpu_custom_call.1} parent=39 // pred_check
          %p500 = pneg %p170
        $region46: #{tpu_custom_call.1} parent=39 // pred_check_branch
          %502 = sbr.rel (%p500) target = $region48
        $region47: #{tpu_custom_call.1} parent=39 // pred_region
          %s503 = smul.u32 4, %s27
          %505 = vsyncadd %s491, 0
          %s506 = smul.addr %s503, 8
          %s507 = scalar_lea.hbm %s5, %s506
          %s508 = sshll.u32 %s494, 4
          %s509 = int_to_ptr.vmem [resolvable:$true] %s508
          %s510 = sshll.u32 %s507, 4
          %s511 = int_to_ptr.hbm [resolvable:$true] %s510
          %516 = dma.vmem_to_hbm [thread:$0]  %s509, 512, %s511, %s491, 128, 128, 8
        $region48: #{tpu_custom_call.1} parent=39 // pred_fallthru
          _
        // Predicated region
        $region49: #{tpu_custom_call.1} parent=39 // pred_check
          %p517 = pneg %p196
        $region50: #{tpu_custom_call.1} parent=39 // pred_check_branch
          %519 = sbr.rel (%p517) target = $region52
        $region51: #{tpu_custom_call.1} parent=39 // pred_region
          %s520 = smul.u32 4, %s27
          %522 = vsyncadd %s496, 0
          %s523 = smul.addr %s520, 8
          %s524 = scalar_lea.hbm %s6, %s523
          %s525 = sshll.u32 %s499, 4
          %s526 = int_to_ptr.vmem [resolvable:$true] %s525
          %s527 = sshll.u32 %s524, 4
          %s528 = int_to_ptr.hbm [resolvable:$true] %s527
          %533 = dma.vmem_to_hbm [thread:$0]  %s526, 512, %s528, %s496, 128, 128, 8
        $region52: #{tpu_custom_call.1} parent=39 // pred_fallthru
          _
      $region40: #{tpu_custom_call.1} parent=5 // pred_fallthru
        _
      %p534 = scmp.le.s32.totalorder 2, %s22
      // Predicated region
      $region53: #{tpu_custom_call.1} parent=5 // pred_check
        %p535 = pneg %p534
      $region54: #{tpu_custom_call.1} parent=5 // pred_check_branch
        %537 = sbr.rel (%p535) target = $region56
      $region55: #{tpu_custom_call.1} parent=5 // pred_region
        %s538 = ssub.s32 %s22, 2
        // Predicated region
        $region57: #{tpu_custom_call.1} parent=55 // pred_check
          %p539 = pneg %p176
        $region58: #{tpu_custom_call.1} parent=55 // pred_check_branch
          %541 = sbr.rel (%p539) target = $region60
        $region59: #{tpu_custom_call.1} parent=55 // pred_region
          %s542 = sand.u32 %s161, 1
          %s543 = scalar_lea.sflag [#allocation4], %s542
          %s544 = sand.u32 %s161, 1
          %s545 = smul.addr %s544, 32
          %s546 = scalar_lea.vmem [#allocation5], %s545
          %548 = dma.done %s543, 512
        $region60: #{tpu_custom_call.1} parent=55 // pred_fallthru
          _
        // Predicated region
        $region61: #{tpu_custom_call.1} parent=55 // pred_check
          %p549 = pneg %p202
        $region62: #{tpu_custom_call.1} parent=55 // pred_check_branch
          %551 = sbr.rel (%p549) target = $region64
        $region63: #{tpu_custom_call.1} parent=55 // pred_region
          %s552 = sand.u32 %s187, 1
          %s553 = scalar_lea.sflag [#allocation7], %s552
          %s554 = sand.u32 %s187, 1
          %s555 = smul.addr %s554, 32
          %s556 = scalar_lea.vmem [#allocation6], %s555
          %558 = dma.done %s553, 512
        $region64: #{tpu_custom_call.1} parent=55 // pred_fallthru
          _
      $region56: #{tpu_custom_call.1} parent=5 // pred_fallthru
        _
    $region6: #{tpu_custom_call.1} parent=1 // loop_footer
      %s26 = sadd.s32 1, %s22
    $region7: #{tpu_custom_call.1} parent=1 // loop_footer_branch
      %21 = sbr.rel target = $region3
    $region8: #{tpu_custom_call.1} parent=1 // loop_exit
      _
    %559 = vsyncpa [#allocation3], 1
    %s560 = scalar_lea.sflag [#allocation3], 1
    %561 = vsyncpa %s560, 1
    %562 = vsyncpa [#allocation4], 1
    %s563 = scalar_lea.sflag [#allocation4], 1
    %564 = vsyncpa %s563, 1
    %565 = vsyncpa [#allocation7], 1
    %s566 = scalar_lea.sflag [#allocation7], 1
    %567 = vsyncpa %s566, 1

</llo_original>
